<compile_context>
chip_gen: v5e
topology: v5e:2x2
jax: 0.10.0
libtpu: 0.0.40
codegen_flags: <defaults>
</compile_context>

<pallas_src>
import functools

import jax
import jax.numpy as jnp
from jax.experimental import pallas as pl
from jax.experimental.pallas import tpu as pltpu

LOG_STD_MIN = -20.0
LOG_STD_MAX = 2.0


def _round_up(x, m):
    return ((x + m - 1) // m) * m


# ---------------------------------------------------------------------------
# Kernel
# ---------------------------------------------------------------------------
def _actor_kernel(state_ref, w1_ref, w2_ref, wh_ref, b_ref, out_ref, *, hpad):
    # Biases are packed into one lane-dense row: [b1 | b2 | b_head].
    b1 = b_ref[:, :hpad]                  # (1, hpad)
    b2 = b_ref[:, hpad:2 * hpad]          # (1, hpad)
    bh = b_ref[:, 2 * hpad:]              # (1, P)

    # fc1 + relu   (bf16 MXU, f32 accumulate)
    x = state_ref[...].astype(jnp.bfloat16)
    h = jnp.dot(x, w1_ref[...], preferred_element_type=jnp.float32)
    h = jnp.maximum(h + b1, 0.0).astype(jnp.bfloat16)

    # fc2 + relu
    h = jnp.dot(h, w2_ref[...], preferred_element_type=jnp.float32)
    h = jnp.maximum(h + b2, 0.0).astype(jnp.bfloat16)

    # fused heads: columns [0, A) = mu, [A, 2A) = log_std, rest = zero padding.
    # log_std clamp is applied in the wrapper on the sliced result.
    y = jnp.dot(h, wh_ref[...], preferred_element_type=jnp.float32) + bh

    # bf16 writeback: halves the dominant HBM traffic (output slab).
    out_ref[...] = y.astype(out_ref.dtype)


# ---------------------------------------------------------------------------
# Param packing (pad H to a 256-lane multiple, fuse heads, cast weights bf16)
# ---------------------------------------------------------------------------
def pack_actor_params(params):
    S, H = params["w1"].shape
    A = params["wmu"].shape[1]
    # 256 fills the v6e/v7x 2x256x256 MXU; also correct (just padded) on v5e.
    H_pad = _round_up(H, 256)
    # Keep the head slab at 128 lanes: the kernel is writeback-bound there.
    P = _round_up(2 * A, 128)

    def pad2(w, r, c):
        return jnp.pad(w, ((0, r - w.shape[0]), (0, c - w.shape[1])))

    w1 = pad2(params["w1"], S, H_pad).astype(jnp.bfloat16)
    w2 = pad2(params["w2"], H_pad, H_pad).astype(jnp.bfloat16)
    w_head = jnp.concatenate([params["wmu"], params["wls"]], axis=1)   # (H, 2A)
    w_head = pad2(w_head, H_pad, P).astype(jnp.bfloat16)

    b1 = pad2(params["b1"], 1, H_pad)
    b2 = pad2(params["b2"], 1, H_pad)
    b_head = pad2(jnp.concatenate([params["bmu"], params["bls"]], axis=1), 1, P)
    b_all = jnp.concatenate([b1, b2, b_head], axis=1).astype(jnp.float32)

    return {
        "w1": w1, "w2": w2, "w_head": w_head, "b_all": b_all,
        "state_size": S, "hidden_pad": H_pad, "head_pad": P, "action_size": A,
    }


# ---------------------------------------------------------------------------
# Wrapper
# ---------------------------------------------------------------------------
def actor_forward(state, packed, *, core_parallel=False):
    """state: (B, state_size) f32. packed: output of pack_actor_params.

    core_parallel=True switches to pltpu.CORE_PARALLEL batch-grid sharding
    (explicit 2-TensorCore split on v7x); default "parallel" is portable.
    """
    B, S = state.shape
    assert S == packed["state_size"]
    H_pad = packed["hidden_pad"]
    P = packed["head_pad"]
    A = packed["action_size"]

    # Batch tiling: per-grid-step overhead (~0.35 us) dwarfs the ~0.1 us of
    # useful work a 256-row tile does, so use big tiles.  16-row alignment
    # keeps bf16 output blocks sublane-dense.
    if B > 2048:
        TB = 1024                                   # many big, even tiles
    elif B > 512:
        TB = _round_up(pl.cdiv(B, 2), 16)           # 2 tiles -> both v7x cores
    else:
        TB = _round_up(max(B, 1), 16)               # single full-array tile
    B_pad = _round_up(B, TB)
    if B_pad != B:
        state = jnp.pad(state, ((0, B_pad - B), (0, 0)))

    kernel = functools.partial(_actor_kernel, hpad=H_pad)
    dim_sem = (pltpu.CORE_PARALLEL,) if core_parallel else ("parallel",)

    out = pl.pallas_call(
        kernel,
        out_shape=jax.ShapeDtypeStruct((B_pad, P), jnp.bfloat16),
        grid=(B_pad // TB,),
        in_specs=[
            pl.BlockSpec((TB, S), lambda i: (i, 0)),              # state tile
            pl.BlockSpec((S, H_pad), lambda i: (0, 0)),           # w1 (resident)
            pl.BlockSpec((H_pad, H_pad), lambda i: (0, 0)),       # w2 (resident)
            pl.BlockSpec((H_pad, P), lambda i: (0, 0)),           # fused heads
            pl.BlockSpec((1, 2 * H_pad + P), lambda i: (0, 0)),   # fused biases
        ],
        out_specs=pl.BlockSpec((TB, P), lambda i: (i, 0)),
        compiler_params=pltpu.CompilerParams(
            dimension_semantics=dim_sem,
            # v5e's default scoped-VMEM limit is only 16 MiB; raise explicitly
            # so scaled-up TB / hidden sizes are not rejected.
            vmem_limit_bytes=32 * 1024 * 1024),
    )(state, packed["w1"], packed["w2"], packed["w_head"], packed["b_all"])

    mu = out[:B, :A].astype(jnp.float32)
    # clamp fuses with the slice; also guarantees exact bounds after the bf16
    # writeback (bounds -20/2 are exactly representable, so math is unchanged).
    log_std = jnp.clip(out[:B, A:2 * A].astype(jnp.float32),
                       LOG_STD_MIN, LOG_STD_MAX)
    return mu, log_std


# ---------------------------------------------------------------------------
# Init (mirrors the PyTorch layer shapes; weights stored as (in, out))
# ---------------------------------------------------------------------------
def init_actor_params(key, state_size, action_size, hidden_size, init_w=0.003):
    k1, k2, k3, k4, k5, k6 = jax.random.split(key, 6)

    def uniform(k, shape, lim):
        return jax.random.uniform(k, shape, jnp.float32, minval=-lim, maxval=lim)

    lim1 = 1.0 / jnp.sqrt(float(state_size))
    lim2 = 1.0 / jnp.sqrt(float(hidden_size))
    return {
        "w1": uniform(k1, (state_size, hidden_size), lim1),
        "b1": uniform(k2, (1, hidden_size), lim1),
        "w2": uniform(k3, (hidden_size, hidden_size), lim2),
        "b2": uniform(k4, (1, hidden_size), lim2),
        "wmu": uniform(k5, (hidden_size, action_size), init_w),
        "bmu": jnp.zeros((1, action_size), jnp.float32),
        "wls": uniform(k6, (hidden_size, action_size), init_w),
        "bls": jnp.zeros((1, action_size), jnp.float32),
    }


if __name__ == "__main__":
    # Small shapes consistent with the module: state_size=16, action_size=8,
    # hidden_size=32, batch=4.
    B, STATE, ACTION, HIDDEN = 4, 16, 8, 32

    key = jax.random.PRNGKey(0)
    pkey, skey = jax.random.split(key)
    params = init_actor_params(pkey, STATE, ACTION, HIDDEN)
    # Make the log_std bias span both clamp boundaries so the clip is exercised.
    params["bls"] = jnp.linspace(-30.0, 6.0, ACTION, dtype=jnp.float32).reshape(1, ACTION)

    state = jax.random.normal(skey, (B, STATE), jnp.float32)

    packed = pack_actor_params(params)
    mu, log_std = actor_forward(state, packed)
    jax.block_until_ready((mu, log_std))

    # Pure-JAX f32 reference of the forward pass (kernel uses bf16 weights,
    # bf16 writeback and f32 accumulation -> modest tolerance).
    def ref_forward(s, p):
        x = jnp.maximum(s @ p["w1"] + p["b1"], 0.0)
        x = jnp.maximum(x @ p["w2"] + p["b2"], 0.0)
        mu_r = x @ p["wmu"] + p["bmu"]
        ls_r = jnp.clip(x @ p["wls"] + p["bls"], LOG_STD_MIN, LOG_STD_MAX)
        return mu_r, ls_r

    mu_r, ls_r = ref_forward(state, params)
    assert mu.shape == (B, ACTION) and log_std.shape == (B, ACTION)
    assert jnp.allclose(mu, mu_r, atol=2e-2, rtol=1e-2), "mu mismatch"
    assert jnp.allclose(log_std, ls_r, atol=2e-2, rtol=1e-2), "log_std mismatch"
    assert float(log_std.min()) >= LOG_STD_MIN - 1e-6
    assert float(log_std.max()) <= LOG_STD_MAX + 1e-6

    print("KERNEL_OK")
</pallas_src>

<mosaic_0001>
module attributes {stable_mosaic.version = 11 : i64} {
  func.func @_actor_kernel(%arg0: i32, %arg1: memref<16x16xf32, #tpu.memory_space<vmem>>, %arg2: memref<16x256xbf16, #tpu.memory_space<vmem>>, %arg3: memref<256x256xbf16, #tpu.memory_space<vmem>>, %arg4: memref<256x128xbf16, #tpu.memory_space<vmem>>, %arg5: memref<1x640xf32, #tpu.memory_space<vmem>>, %arg6: memref<16x128xbf16, #tpu.memory_space<vmem>>) attributes {dimension_semantics = [#tpu.dimension_semantics<parallel>], iteration_bounds = array<i64: 1>, scalar_prefetch = 0 : i64, scratch_operands = 0 : i64, tpu.core_type = #tpu.core_type<tc>, window_params = [{transform_indices = @transform_0, window_bounds = array<i64: 16, 16>}, {pipeline_mode = #tpu.pipeline_mode<synchronous>, transform_indices = @transform_1, window_bounds = array<i64: 16, 256>}, {pipeline_mode = #tpu.pipeline_mode<synchronous>, transform_indices = @transform_2, window_bounds = array<i64: 256, 256>}, {pipeline_mode = #tpu.pipeline_mode<synchronous>, transform_indices = @transform_3, window_bounds = array<i64: 256, 128>}, {pipeline_mode = #tpu.pipeline_mode<synchronous>, transform_indices = @transform_4, window_bounds = array<i64: 1, 640>}, {transform_indices = @transform_5, window_bounds = array<i64: 16, 128>}]} {
    %c0 = arith.constant 0 : index
    %c0_0 = arith.constant 0 : index
    %0 = vector.load %arg5[%c0, %c0_0] : memref<1x640xf32, #tpu.memory_space<vmem>>, vector<1x256xf32>
    %c0_1 = arith.constant 0 : index
    %c256 = arith.constant 256 : index
    %1 = vector.load %arg5[%c0_1, %c256] : memref<1x640xf32, #tpu.memory_space<vmem>>, vector<1x256xf32>
    %c0_2 = arith.constant 0 : index
    %c512 = arith.constant 512 : index
    %2 = vector.load %arg5[%c0_2, %c512] : memref<1x640xf32, #tpu.memory_space<vmem>>, vector<1x128xf32>
    %c0_3 = arith.constant 0 : index
    %c0_4 = arith.constant 0 : index
    %3 = vector.load %arg1[%c0_3, %c0_4] : memref<16x16xf32, #tpu.memory_space<vmem>>, vector<16x16xf32>
    %4 = arith.truncf %3 : vector<16x16xf32> to vector<16x16xbf16>
    %c0_5 = arith.constant 0 : index
    %c0_6 = arith.constant 0 : index
    %5 = vector.load %arg2[%c0_5, %c0_6] : memref<16x256xbf16, #tpu.memory_space<vmem>>, vector<16x256xbf16>
    %cst = arith.constant dense<0.000000e+00> : vector<16x256xf32>
    %6 = tpu.matmul %4, %5, %cst {dimension_numbers = #tpu.dot_dimension_numbers<[1], [0], [0], [1], [0, 0, 1, 1], [], []>} : vector<16x16xbf16>, vector<16x256xbf16>, vector<16x256xf32> -> vector<16x256xf32>
    %7 = vector.broadcast %0 : vector<1x256xf32> to vector<16x256xf32>
    %8 = arith.addf %6, %7 : vector<16x256xf32>
    %cst_7 = arith.constant 0.000000e+00 : f32
    %9 = vector.broadcast %cst_7 : f32 to vector<16x256xf32>
    %10 = arith.maximumf %8, %9 : vector<16x256xf32>
    %11 = arith.truncf %10 : vector<16x256xf32> to vector<16x256xbf16>
    %c0_8 = arith.constant 0 : index
    %c0_9 = arith.constant 0 : index
    %12 = vector.load %arg3[%c0_8, %c0_9] : memref<256x256xbf16, #tpu.memory_space<vmem>>, vector<256x256xbf16>
    %cst_10 = arith.constant dense<0.000000e+00> : vector<16x256xf32>
    %13 = tpu.matmul %11, %12, %cst_10 {dimension_numbers = #tpu.dot_dimension_numbers<[1], [0], [0], [1], [0, 0, 1, 1], [], []>} : vector<16x256xbf16>, vector<256x256xbf16>, vector<16x256xf32> -> vector<16x256xf32>
    %14 = vector.broadcast %1 : vector<1x256xf32> to vector<16x256xf32>
    %15 = arith.addf %13, %14 : vector<16x256xf32>
    %cst_11 = arith.constant 0.000000e+00 : f32
    %16 = vector.broadcast %cst_11 : f32 to vector<16x256xf32>
    %17 = arith.maximumf %15, %16 : vector<16x256xf32>
    %18 = arith.truncf %17 : vector<16x256xf32> to vector<16x256xbf16>
    %c0_12 = arith.constant 0 : index
    %c0_13 = arith.constant 0 : index
    %19 = vector.load %arg4[%c0_12, %c0_13] : memref<256x128xbf16, #tpu.memory_space<vmem>>, vector<256x128xbf16>
    %cst_14 = arith.constant dense<0.000000e+00> : vector<16x128xf32>
    %20 = tpu.matmul %18, %19, %cst_14 {dimension_numbers = #tpu.dot_dimension_numbers<[1], [0], [0], [1], [0, 0, 1, 1], [], []>} : vector<16x256xbf16>, vector<256x128xbf16>, vector<16x128xf32> -> vector<16x128xf32>
    %21 = vector.broadcast %2 : vector<1x128xf32> to vector<16x128xf32>
    %22 = arith.addf %20, %21 : vector<16x128xf32>
    %23 = arith.truncf %22 : vector<16x128xf32> to vector<16x128xbf16>
    %c0_15 = arith.constant 0 : index
    %c0_16 = arith.constant 0 : index
    %24 = vector.load %arg6[%c0_15, %c0_16] : memref<16x128xbf16, #tpu.memory_space<vmem>>, vector<16x128xbf16>
    tpu.vector_store %arg6[%c0_15, %c0_16], %23 {strides = array<i32>} : memref<16x128xbf16, #tpu.memory_space<vmem>>, vector<16x128xbf16>,
    return
  }
  func.func @transform_0(%arg0: i32) -> (i32, i32) {
    %c0_i32 = arith.constant 0 : i32
    %c0_i32_0 = arith.constant 0 : i32
    return %arg0, %c0_i32 : i32, i32
  }
  func.func @transform_1(%arg0: i32) -> (i32, i32) {
    %c0_i32 = arith.constant 0 : i32
    %c0_i32_0 = arith.constant 0 : i32
    %c0_i32_1 = arith.constant 0 : i32
    return %c0_i32, %c0_i32_0 : i32, i32
  }
  func.func @transform_2(%arg0: i32) -> (i32, i32) {
    %c0_i32 = arith.constant 0 : i32
    %c0_i32_0 = arith.constant 0 : i32
    %c0_i32_1 = arith.constant 0 : i32
    return %c0_i32, %c0_i32_0 : i32, i32
  }
  func.func @transform_3(%arg0: i32) -> (i32, i32) {
    %c0_i32 = arith.constant 0 : i32
    %c0_i32_0 = arith.constant 0 : i32
    %c0_i32_1 = arith.constant 0 : i32
    return %c0_i32, %c0_i32_0 : i32, i32
  }
  func.func @transform_4(%arg0: i32) -> (i32, i32) {
    %c0_i32 = arith.constant 0 : i32
    %c0_i32_0 = arith.constant 0 : i32
    %c0_i32_1 = arith.constant 0 : i32
    return %c0_i32, %c0_i32_0 : i32, i32
  }
  func.func @transform_5(%arg0: i32) -> (i32, i32) {
    %c0_i32 = arith.constant 0 : i32
    %c0_i32_0 = arith.constant 0 : i32
    return %arg0, %c0_i32 : i32, i32
  }
}

</mosaic_0001>

<llo_original>
// kernel: tpu_custom_call.1
$region0: #{tpu_custom_call.1}
  #allocation0 [shape = 'u32[]', space=smem, size = 0x4, offset = 0x4, fixed_abs, tag = 'smem constant byte address 0x4 - core index']
  #allocation1 [shape = 'u32[72,128]{1,0:T(1,128)}', space=vmem, size = 0x9000, scoped, tag = 'internal scratch']
  %s0 = inlined_call_operand.hbm [shape: f32[16,16], index: 0, kind: input, shape index: {}]
  %s1 = inlined_call_operand.hbm [shape: bf16[16,256], index: 1, kind: input, shape index: {}]
  %s2 = inlined_call_operand.hbm [shape: bf16[256,256], index: 2, kind: input, shape index: {}]
  %s3 = inlined_call_operand.hbm [shape: bf16[256,128], index: 3, kind: input, shape index: {}]
  %s4 = inlined_call_operand.hbm [shape: f32[1,640], index: 4, kind: input, shape index: {}]
  %s5 = inlined_call_operand.hbm [shape: bf16[16,128], index: 5, kind: output, shape index: {}]
  %s6 = sld [smem:[#allocation0]]
  $region50: #{tpu_custom_call.1} parent=0
    _
  %s8 = ssub.s32 1, %s6
  %s9 = scalar_select 0, %s8, %s6
  $region1: #{tpu_custom_call.1} parent=0
    #allocation2 [shape = 'u8[8192]{0}', space=vmem, size = 0x2000, scoped, tag = 'input window, operand 0, single buffered']
    #allocation3 [shape = 's32[1]{0}', space=sflag, size = 0x4, scoped, tag = 'scoped memory for tpu_custom_call.1']
    #allocation4 [shape = 's32[1]{0}', space=sflag, size = 0x4, scoped, tag = 'scoped memory for tpu_custom_call.1']
    #allocation5 [shape = 'u8[8192]{0}', space=vmem, size = 0x2000, scoped, tag = 'input window, operand 1, single buffered']
    #allocation6 [shape = 's32[1]{0}', space=sflag, size = 0x4, scoped, tag = 'scoped memory for tpu_custom_call.1']
    #allocation7 [shape = 'u8[131072]{0}', space=vmem, size = 0x20000, scoped, tag = 'input window, operand 2, single buffered']
    #allocation8 [shape = 'u8[65536]{0}', space=vmem, size = 0x10000, scoped, tag = 'input window, operand 3, single buffered']
    #allocation9 [shape = 's32[1]{0}', space=sflag, size = 0x4, scoped, tag = 'scoped memory for tpu_custom_call.1']
    #allocation10 [shape = 'u8[2560]{0}', space=vmem, size = 0xc00, scoped, tag = 'input window, operand 4, single buffered']
    #allocation11 [shape = 'u8[4096]{0}', space=vmem, size = 0x1000, scoped, tag = 'output window, operand 0, single buffered']
    %10 = vsyncpa [#allocation3], 0
    %11 = vsyncpa [#allocation6], 0
    %12 = vsyncpa [#allocation9], 0
    %13 = vsyncpa [#allocation4], 0
    // Predicated region
    $region2: #{tpu_custom_call.1} parent=1 // pred_check
      _
    $region3: #{tpu_custom_call.1} parent=1 // pred_check_branch
      %15 = sbr.rel (0) target = $region5
    $region4: #{tpu_custom_call.1} parent=1 // pred_region
      %17 = vsyncadd [#allocation3], 0
      %s18 = sshll.u32 %s0, 4
      %s19 = int_to_ptr.hbm [resolvable:$true] %s18
      %s20 = sshll.u32 [#allocation2], 4
      %s21 = int_to_ptr.vmem [resolvable:$true] %s20
      %26 = dma.hbm_to_vmem [thread:$0]  %s19, 256, %s21, [#allocation3], 128, 128, 8
    $region5: #{tpu_custom_call.1} parent=1 // pred_fallthru
      _
    // Predicated region
    $region6: #{tpu_custom_call.1} parent=1 // pred_check
      _
    $region7: #{tpu_custom_call.1} parent=1 // pred_check_branch
      %28 = sbr.rel (0) target = $region9
    $region8: #{tpu_custom_call.1} parent=1 // pred_region
      %30 = vsyncadd [#allocation6], 0
      %s31 = sshll.u32 %s1, 4
      %s32 = int_to_ptr.hbm [resolvable:$true] %s31
      %s33 = sshll.u32 [#allocation5], 4
      %s34 = int_to_ptr.vmem [resolvable:$true] %s33
      %39 = dma.hbm_to_vmem [thread:$0]  %s32, 256, %s34, [#allocation6], 128, 128, 8
    $region9: #{tpu_custom_call.1} parent=1 // pred_fallthru
      _
    // Predicated region
    $region10: #{tpu_custom_call.1} parent=1 // pred_check
      _
    $region11: #{tpu_custom_call.1} parent=1 // pred_check_branch
      %41 = sbr.rel (0) target = $region13
    $region12: #{tpu_custom_call.1} parent=1 // pred_region
      %43 = vsyncadd [#allocation6], 0
      %s44 = sshll.u32 %s2, 4
      %s45 = int_to_ptr.hbm [resolvable:$true] %s44
      %s46 = sshll.u32 [#allocation7], 4
      %s47 = int_to_ptr.vmem [resolvable:$true] %s46
      %52 = dma.hbm_to_vmem [thread:$0]  %s45, 4096, %s47, [#allocation6], 128, 128, 8
    $region13: #{tpu_custom_call.1} parent=1 // pred_fallthru
      _
    // Predicated region
    $region14: #{tpu_custom_call.1} parent=1 // pred_check
      _
    $region15: #{tpu_custom_call.1} parent=1 // pred_check_branch
      %54 = sbr.rel (0) target = $region17
    $region16: #{tpu_custom_call.1} parent=1 // pred_region
      %56 = vsyncadd [#allocation9], 0
      %s57 = sshll.u32 %s3, 4
      %s58 = int_to_ptr.hbm [resolvable:$true] %s57
      %s59 = sshll.u32 [#allocation8], 4
      %s60 = int_to_ptr.vmem [resolvable:$true] %s59
      %65 = dma.hbm_to_vmem [thread:$0]  %s58, 2048, %s60, [#allocation9], 64, 64, 4
    $region17: #{tpu_custom_call.1} parent=1 // pred_fallthru
      _
    // Predicated region
    $region18: #{tpu_custom_call.1} parent=1 // pred_check
      _
    $region19: #{tpu_custom_call.1} parent=1 // pred_check_branch
      %67 = sbr.rel (0) target = $region21
    $region20: #{tpu_custom_call.1} parent=1 // pred_region
      %69 = vsyncadd [#allocation9], 0
      %s71 = sshll.u32 %s4, 4
      %s72 = int_to_ptr.hbm [resolvable:$true] %s71
      %s73 = sshll.u32 [#allocation10], 4
      %s74 = int_to_ptr.vmem [resolvable:$true] %s73
      %76 = dma.hbm_to_vmem [thread:$0]  %s72, 80, %s74, [#allocation9]
    $region21: #{tpu_custom_call.1} parent=1 // pred_fallthru
      _
    // Predicated region
    $region22: #{tpu_custom_call.1} parent=1 // pred_check
      _
    $region23: #{tpu_custom_call.1} parent=1 // pred_check_branch
      %78 = sbr.rel (0) target = $region25
    $region24: #{tpu_custom_call.1} parent=1 // pred_region
      %80 = dma.done [#allocation3], 256
    $region25: #{tpu_custom_call.1} parent=1 // pred_fallthru
      _
    // Predicated region
    $region26: #{tpu_custom_call.1} parent=1 // pred_check
      _
    $region27: #{tpu_custom_call.1} parent=1 // pred_check_branch
      %82 = sbr.rel (0) target = $region29
    $region28: #{tpu_custom_call.1} parent=1 // pred_region
      %84 = dma.done [#allocation6], 256
    $region29: #{tpu_custom_call.1} parent=1 // pred_fallthru
      _
    // Predicated region
    $region30: #{tpu_custom_call.1} parent=1 // pred_check
      _
    $region31: #{tpu_custom_call.1} parent=1 // pred_check_branch
      %86 = sbr.rel (0) target = $region33
    $region32: #{tpu_custom_call.1} parent=1 // pred_region
      %88 = dma.done [#allocation6], 4096
    $region33: #{tpu_custom_call.1} parent=1 // pred_fallthru
      _
    // Predicated region
    $region34: #{tpu_custom_call.1} parent=1 // pred_check
      _
    $region35: #{tpu_custom_call.1} parent=1 // pred_check_branch
      %90 = sbr.rel (0) target = $region37
    $region36: #{tpu_custom_call.1} parent=1 // pred_region
      %92 = dma.done [#allocation9], 2048
    $region37: #{tpu_custom_call.1} parent=1 // pred_fallthru
      _
    // Predicated region
    $region38: #{tpu_custom_call.1} parent=1 // pred_check
      _
    $region39: #{tpu_custom_call.1} parent=1 // pred_check_branch
      %94 = sbr.rel (0) target = $region41
    $region40: #{tpu_custom_call.1} parent=1 // pred_region
      %96 = dma.done [#allocation9], 80
    $region41: #{tpu_custom_call.1} parent=1 // pred_fallthru
      _
    %v98 = vld [vmem:[#allocation10] sm:$0x3]
    %v99 = vld [vmem:[#allocation10 + $0x2] sm:$0x3]
    %v100 = vld [vmem:[#allocation10 + $0x4] sm:$0x1]
    %v101 = vld [vmem:[#allocation2] sm:$0xff]
    %v102 = vld [vmem:[#allocation2 + $0x8] sm:$0xff]
    %v103 = vpack.c.bf16 %v102, %v101
    %v104 = vld [vmem:[#allocation5] sm:$0xff]
    %v105 = vld [vmem:[#allocation5 + $0x8] sm:$0xff]
    %v107 = vperm.slane %v98, 0
    %v108 = vperm.slane %v98, 1
    %v113 = vunpack.c.l.b16 %v104
    %v114 = vunpack.c.h.b16 %v104
    %v115 = vunpack.c.l.b16 %v105
    %v116 = vunpack.c.h.b16 %v105
    %v117 = vpack.c.b16 %v115, %v113
    %v118 = vpack.c.b16 %v116, %v114
    %vm121 = vcmask 130048
    %v123 = vsel %vm121, %v103, 0
    %125 = vmatpush.bf16.msra.mxu0 0
    %126 = vmatpush.bf16.msra.mxu0 0
    %127 = vmatpush.bf16.msra.mxu0 0
    %128 = vmatpush.bf16.msra.mxu0 0
    %129 = vmatpush.bf16.msra.mxu0 0
    %130 = vmatpush.bf16.msra.mxu0 0
    %131 = vmatpush.bf16.msra.mxu0 0
    %132 = vmatpush.bf16.msra.mxu0 %v117
    %133 = vmatmul.bf16.gmra.mxu0 %v123
    %v134 = vpop.f32.mrf.mxu0
    %v135 = vadd.f32 %v107, %v134
    %v136 = vpop.f32.mrf.mxu0
    %v137 = vadd.f32 %v107, %v136
    %138 = vdwg.mxu0
    %139 = vmatpush.bf16.msra.mxu0 0
    %140 = vmatpush.bf16.msra.mxu0 0
    %141 = vmatpush.bf16.msra.mxu0 0
    %142 = vmatpush.bf16.msra.mxu0 0
    %143 = vmatpush.bf16.msra.mxu0 0
    %144 = vmatpush.bf16.msra.mxu0 0
    %145 = vmatpush.bf16.msra.mxu0 0
    %146 = vmatpush.bf16.msra.mxu0 %v118
    %147 = vmatmul.bf16.gmra.mxu0 %v123
    %v148 = vpop.f32.mrf.mxu0
    %v149 = vadd.f32 %v108, %v148
    %v150 = vpop.f32.mrf.mxu0
    %v151 = vadd.f32 %v108, %v150
    %152 = vdwg.mxu0
    %v153 = vmax.f32 %v135, 0.0
    %v154 = vmax.f32 %v149, 0.0
    %v155 = vmax.f32 %v137, 0.0
    %v156 = vmax.f32 %v151, 0.0
    %v157 = vpack.c.bf16 %v155, %v153
    %v158 = vpack.c.bf16 %v156, %v154
    %v159 = vld [vmem:[#allocation7] sm:$0xff]
    %v160 = vld [vmem:[#allocation7 + $0x8] sm:$0xff]
    %v161 = vld [vmem:[#allocation7 + $0x10] sm:$0xff]
    %v162 = vld [vmem:[#allocation7 + $0x18] sm:$0xff]
    %v163 = vld [vmem:[#allocation7 + $0x20] sm:$0xff]
    %v164 = vld [vmem:[#allocation7 + $0x28] sm:$0xff]
    %v165 = vld [vmem:[#allocation7 + $0x30] sm:$0xff]
    %v166 = vld [vmem:[#allocation7 + $0x38] sm:$0xff]
    %v167 = vld [vmem:[#allocation7 + $0x40] sm:$0xff]
    %v168 = vld [vmem:[#allocation7 + $0x48] sm:$0xff]
    %v169 = vld [vmem:[#allocation7 + $0x50] sm:$0xff]
    %v170 = vld [vmem:[#allocation7 + $0x58] sm:$0xff]
    %v171 = vld [vmem:[#allocation7 + $0x60] sm:$0xff]
    %v172 = vld [vmem:[#allocation7 + $0x68] sm:$0xff]
    %v173 = vld [vmem:[#allocation7 + $0x70] sm:$0xff]
    %v174 = vld [vmem:[#allocation7 + $0x78] sm:$0xff]
    %v175 = vld [vmem:[#allocation7 + $0x80] sm:$0xff]
    %v176 = vld [vmem:[#allocation7 + $0x88] sm:$0xff]
    %v177 = vld [vmem:[#allocation7 + $0x90] sm:$0xff]
    %v178 = vld [vmem:[#allocation7 + $0x98] sm:$0xff]
    %v179 = vld [vmem:[#allocation7 + $0xa0] sm:$0xff]
    %v180 = vld [vmem:[#allocation7 + $0xa8] sm:$0xff]
    %v181 = vld [vmem:[#allocation7 + $0xb0] sm:$0xff]
    %v182 = vld [vmem:[#allocation7 + $0xb8] sm:$0xff]
    %v183 = vld [vmem:[#allocation7 + $0xc0] sm:$0xff]
    %v184 = vld [vmem:[#allocation7 + $0xc8] sm:$0xff]
    %v185 = vld [vmem:[#allocation7 + $0xd0] sm:$0xff]
    %v186 = vld [vmem:[#allocation7 + $0xd8] sm:$0xff]
    %v187 = vld [vmem:[#allocation7 + $0xe0] sm:$0xff]
    %v188 = vld [vmem:[#allocation7 + $0xe8] sm:$0xff]
    %v189 = vld [vmem:[#allocation7 + $0xf0] sm:$0xff]
    %v190 = vld [vmem:[#allocation7 + $0xf8] sm:$0xff]
    %v192 = vperm.slane %v99, 0
    %v193 = vperm.slane %v99, 1
    %v228 = vunpack.c.l.b16 %v159
    %v229 = vunpack.c.h.b16 %v159
    %v230 = vunpack.c.l.b16 %v160
    %v231 = vunpack.c.h.b16 %v160
    %v232 = vunpack.c.l.b16 %v161
    %v233 = vunpack.c.h.b16 %v161
    %v234 = vunpack.c.l.b16 %v162
    %v235 = vunpack.c.h.b16 %v162
    %v236 = vunpack.c.l.b16 %v163
    %v237 = vunpack.c.h.b16 %v163
    %v238 = vunpack.c.l.b16 %v164
    %v239 = vunpack.c.h.b16 %v164
    %v240 = vunpack.c.l.b16 %v165
    %v241 = vunpack.c.h.b16 %v165
    %v242 = vunpack.c.l.b16 %v166
    %v243 = vunpack.c.h.b16 %v166
    %v244 = vunpack.c.l.b16 %v167
    %v245 = vunpack.c.h.b16 %v167
    %v246 = vunpack.c.l.b16 %v168
    %v247 = vunpack.c.h.b16 %v168
    %v248 = vunpack.c.l.b16 %v169
    %v249 = vunpack.c.h.b16 %v169
    %v250 = vunpack.c.l.b16 %v170
    %v251 = vunpack.c.h.b16 %v170
    %v252 = vunpack.c.l.b16 %v171
    %v253 = vunpack.c.h.b16 %v171
    %v254 = vunpack.c.l.b16 %v172
    %v255 = vunpack.c.h.b16 %v172
    %v256 = vunpack.c.l.b16 %v173
    %v257 = vunpack.c.h.b16 %v173
    %v258 = vunpack.c.l.b16 %v174
    %v259 = vunpack.c.h.b16 %v174
    %v260 = vunpack.c.l.b16 %v175
    %v261 = vunpack.c.h.b16 %v175
    %v262 = vunpack.c.l.b16 %v176
    %v263 = vunpack.c.h.b16 %v176
    %v264 = vunpack.c.l.b16 %v177
    %v265 = vunpack.c.h.b16 %v177
    %v266 = vunpack.c.l.b16 %v178
    %v267 = vunpack.c.h.b16 %v178
    %v268 = vunpack.c.l.b16 %v179
    %v269 = vunpack.c.h.b16 %v179
    %v270 = vunpack.c.l.b16 %v180
    %v271 = vunpack.c.h.b16 %v180
    %v272 = vunpack.c.l.b16 %v181
    %v273 = vunpack.c.h.b16 %v181
    %v274 = vunpack.c.l.b16 %v182
    %v275 = vunpack.c.h.b16 %v182
    %v276 = vunpack.c.l.b16 %v183
    %v277 = vunpack.c.h.b16 %v183
    %v278 = vunpack.c.l.b16 %v184
    %v279 = vunpack.c.h.b16 %v184
    %v280 = vunpack.c.l.b16 %v185
    %v281 = vunpack.c.h.b16 %v185
    %v282 = vunpack.c.l.b16 %v186
    %v283 = vunpack.c.h.b16 %v186
    %v284 = vunpack.c.l.b16 %v187
    %v285 = vunpack.c.h.b16 %v187
    %v286 = vunpack.c.l.b16 %v188
    %v287 = vunpack.c.h.b16 %v188
    %v288 = vunpack.c.l.b16 %v189
    %v289 = vunpack.c.h.b16 %v189
    %v290 = vunpack.c.l.b16 %v190
    %v291 = vunpack.c.h.b16 %v190
    %v292 = vpack.c.b16 %v230, %v228
    %v293 = vpack.c.b16 %v231, %v229
    %v294 = vpack.c.b16 %v234, %v232
    %v295 = vpack.c.b16 %v235, %v233
    %v296 = vpack.c.b16 %v238, %v236
    %v297 = vpack.c.b16 %v239, %v237
    %v298 = vpack.c.b16 %v242, %v240
    %v299 = vpack.c.b16 %v243, %v241
    %v300 = vpack.c.b16 %v246, %v244
    %v301 = vpack.c.b16 %v247, %v245
    %v302 = vpack.c.b16 %v250, %v248
    %v303 = vpack.c.b16 %v251, %v249
    %v304 = vpack.c.b16 %v254, %v252
    %v305 = vpack.c.b16 %v255, %v253
    %v306 = vpack.c.b16 %v258, %v256
    %v307 = vpack.c.b16 %v259, %v257
    %v308 = vpack.c.b16 %v262, %v260
    %v309 = vpack.c.b16 %v263, %v261
    %v310 = vpack.c.b16 %v266, %v264
    %v311 = vpack.c.b16 %v267, %v265
    %v312 = vpack.c.b16 %v270, %v268
    %v313 = vpack.c.b16 %v271, %v269
    %v314 = vpack.c.b16 %v274, %v272
    %v315 = vpack.c.b16 %v275, %v273
    %v316 = vpack.c.b16 %v278, %v276
    %v317 = vpack.c.b16 %v279, %v277
    %v318 = vpack.c.b16 %v282, %v280
    %v319 = vpack.c.b16 %v283, %v281
    %v320 = vpack.c.b16 %v286, %v284
    %v321 = vpack.c.b16 %v287, %v285
    %v322 = vpack.c.b16 %v290, %v288
    %v323 = vpack.c.b16 %v291, %v289
    %356 = vmatpush.bf16.msra.mxu0 %v306
    %357 = vmatpush.bf16.msra.mxu0 %v304
    %358 = vmatpush.bf16.msra.mxu0 %v302
    %359 = vmatpush.bf16.msra.mxu0 %v300
    %360 = vmatpush.bf16.msra.mxu0 %v298
    %361 = vmatpush.bf16.msra.mxu0 %v296
    %362 = vmatpush.bf16.msra.mxu0 %v294
    %363 = vmatpush.bf16.msra.mxu0 %v292
    %364 = vmatmul.bf16.gmra.mxu0 %v157
    %v365 = vpop.f32.mrf.mxu0
    %v366 = vadd.f32 %v192, %v365
    %v367 = vpop.f32.mrf.mxu0
    %v368 = vadd.f32 %v192, %v367
    %369 = vdwg.mxu0
    %370 = vmatpush.bf16.msra.mxu0 %v322
    %371 = vmatpush.bf16.msra.mxu0 %v320
    %372 = vmatpush.bf16.msra.mxu0 %v318
    %373 = vmatpush.bf16.msra.mxu0 %v316
    %374 = vmatpush.bf16.msra.mxu0 %v314
    %375 = vmatpush.bf16.msra.mxu0 %v312
    %376 = vmatpush.bf16.msra.mxu0 %v310
    %377 = vmatpush.bf16.msra.mxu0 %v308
    %378 = vmatmul.bf16.gmra.mxu0 %v158
    %v379 = vpop.f32.mrf.mxu0
    %v380 = vadd.f32 %v366, %v379
    %v381 = vpop.f32.mrf.mxu0
    %v382 = vadd.f32 %v368, %v381
    %383 = vdwg.mxu0
    %384 = vmatpush.bf16.msra.mxu0 %v307
    %385 = vmatpush.bf16.msra.mxu0 %v305
    %386 = vmatpush.bf16.msra.mxu0 %v303
    %387 = vmatpush.bf16.msra.mxu0 %v301
    %388 = vmatpush.bf16.msra.mxu0 %v299
    %389 = vmatpush.bf16.msra.mxu0 %v297
    %390 = vmatpush.bf16.msra.mxu0 %v295
    %391 = vmatpush.bf16.msra.mxu0 %v293
    %392 = vmatmul.bf16.gmra.mxu0 %v157
    %v393 = vpop.f32.mrf.mxu0
    %v394 = vadd.f32 %v193, %v393
    %v395 = vpop.f32.mrf.mxu0
    %v396 = vadd.f32 %v193, %v395
    %397 = vdwg.mxu0
    %398 = vmatpush.bf16.msra.mxu0 %v323
    %399 = vmatpush.bf16.msra.mxu0 %v321
    %400 = vmatpush.bf16.msra.mxu0 %v319
    %401 = vmatpush.bf16.msra.mxu0 %v317
    %402 = vmatpush.bf16.msra.mxu0 %v315
    %403 = vmatpush.bf16.msra.mxu0 %v313
    %404 = vmatpush.bf16.msra.mxu0 %v311
    %405 = vmatpush.bf16.msra.mxu0 %v309
    %406 = vmatmul.bf16.gmra.mxu0 %v158
    %v407 = vpop.f32.mrf.mxu0
    %v408 = vadd.f32 %v394, %v407
    %v409 = vpop.f32.mrf.mxu0
    %v410 = vadd.f32 %v396, %v409
    %411 = vdwg.mxu0
    %v412 = vmax.f32 %v380, 0.0
    %v413 = vmax.f32 %v408, 0.0
    %v414 = vmax.f32 %v382, 0.0
    %v415 = vmax.f32 %v410, 0.0
    %v416 = vpack.c.bf16 %v414, %v412
    %v417 = vpack.c.bf16 %v415, %v413
    %v418 = vld [vmem:[#allocation8] sm:$0xf]
    %v419 = vld [vmem:[#allocation8 + $0x4] sm:$0xf]
    %v420 = vld [vmem:[#allocation8 + $0x8] sm:$0xf]
    %v421 = vld [vmem:[#allocation8 + $0xc] sm:$0xf]
    %v422 = vld [vmem:[#allocation8 + $0x10] sm:$0xf]
    %v423 = vld [vmem:[#allocation8 + $0x14] sm:$0xf]
    %v424 = vld [vmem:[#allocation8 + $0x18] sm:$0xf]
    %v425 = vld [vmem:[#allocation8 + $0x1c] sm:$0xf]
    %v426 = vld [vmem:[#allocation8 + $0x20] sm:$0xf]
    %v427 = vld [vmem:[#allocation8 + $0x24] sm:$0xf]
    %v428 = vld [vmem:[#allocation8 + $0x28] sm:$0xf]
    %v429 = vld [vmem:[#allocation8 + $0x2c] sm:$0xf]
    %v430 = vld [vmem:[#allocation8 + $0x30] sm:$0xf]
    %v431 = vld [vmem:[#allocation8 + $0x34] sm:$0xf]
    %v432 = vld [vmem:[#allocation8 + $0x38] sm:$0xf]
    %v433 = vld [vmem:[#allocation8 + $0x3c] sm:$0xf]
    %v434 = vld [vmem:[#allocation8 + $0x40] sm:$0xf]
    %v435 = vld [vmem:[#allocation8 + $0x44] sm:$0xf]
    %v436 = vld [vmem:[#allocation8 + $0x48] sm:$0xf]
    %v437 = vld [vmem:[#allocation8 + $0x4c] sm:$0xf]
    %v438 = vld [vmem:[#allocation8 + $0x50] sm:$0xf]
    %v439 = vld [vmem:[#allocation8 + $0x54] sm:$0xf]
    %v440 = vld [vmem:[#allocation8 + $0x58] sm:$0xf]
    %v441 = vld [vmem:[#allocation8 + $0x5c] sm:$0xf]
    %v442 = vld [vmem:[#allocation8 + $0x60] sm:$0xf]
    %v443 = vld [vmem:[#allocation8 + $0x64] sm:$0xf]
    %v444 = vld [vmem:[#allocation8 + $0x68] sm:$0xf]
    %v445 = vld [vmem:[#allocation8 + $0x6c] sm:$0xf]
    %v446 = vld [vmem:[#allocation8 + $0x70] sm:$0xf]
    %v447 = vld [vmem:[#allocation8 + $0x74] sm:$0xf]
    %v448 = vld [vmem:[#allocation8 + $0x78] sm:$0xf]
    %v449 = vld [vmem:[#allocation8 + $0x7c] sm:$0xf]
    %v451 = vperm.slane %v100, 0
    %v485 = vunpack.c.l.b16 %v418
    %v486 = vunpack.c.l.b16 %v419
    %v487 = vunpack.c.l.b16 %v420
    %v488 = vunpack.c.l.b16 %v421
    %v489 = vunpack.c.l.b16 %v422
    %v490 = vunpack.c.l.b16 %v423
    %v491 = vunpack.c.l.b16 %v424
    %v492 = vunpack.c.l.b16 %v425
    %v493 = vunpack.c.l.b16 %v426
    %v494 = vunpack.c.l.b16 %v427
    %v495 = vunpack.c.l.b16 %v428
    %v496 = vunpack.c.l.b16 %v429
    %v497 = vunpack.c.l.b16 %v430
    %v498 = vunpack.c.l.b16 %v431
    %v499 = vunpack.c.l.b16 %v432
    %v500 = vunpack.c.l.b16 %v433
    %v501 = vunpack.c.l.b16 %v434
    %v502 = vunpack.c.l.b16 %v435
    %v503 = vunpack.c.l.b16 %v436
    %v504 = vunpack.c.l.b16 %v437
    %v505 = vunpack.c.l.b16 %v438
    %v506 = vunpack.c.l.b16 %v439
    %v507 = vunpack.c.l.b16 %v440
    %v508 = vunpack.c.l.b16 %v441
    %v509 = vunpack.c.l.b16 %v442
    %v510 = vunpack.c.l.b16 %v443
    %v511 = vunpack.c.l.b16 %v444
    %v512 = vunpack.c.l.b16 %v445
    %v513 = vunpack.c.l.b16 %v446
    %v514 = vunpack.c.l.b16 %v447
    %v515 = vunpack.c.l.b16 %v448
    %v516 = vunpack.c.l.b16 %v449
    %v517 = vpack.c.b16 %v486, %v485
    %v518 = vpack.c.b16 %v488, %v487
    %v519 = vpack.c.b16 %v490, %v489
    %v520 = vpack.c.b16 %v492, %v491
    %v521 = vpack.c.b16 %v494, %v493
    %v522 = vpack.c.b16 %v496, %v495
    %v523 = vpack.c.b16 %v498, %v497
    %v524 = vpack.c.b16 %v500, %v499
    %v525 = vpack.c.b16 %v502, %v501
    %v526 = vpack.c.b16 %v504, %v503
    %v527 = vpack.c.b16 %v506, %v505
    %v528 = vpack.c.b16 %v508, %v507
    %v529 = vpack.c.b16 %v510, %v509
    %v530 = vpack.c.b16 %v512, %v511
    %v531 = vpack.c.b16 %v514, %v513
    %v532 = vpack.c.b16 %v516, %v515
    %549 = vmatpush.bf16.msra.mxu0 %v524
    %550 = vmatpush.bf16.msra.mxu0 %v523
    %551 = vmatpush.bf16.msra.mxu0 %v522
    %552 = vmatpush.bf16.msra.mxu0 %v521
    %553 = vmatpush.bf16.msra.mxu0 %v520
    %554 = vmatpush.bf16.msra.mxu0 %v519
    %555 = vmatpush.bf16.msra.mxu0 %v518
    %556 = vmatpush.bf16.msra.mxu0 %v517
    %557 = vmatmul.bf16.gmra.mxu0 %v416
    %v558 = vpop.f32.mrf.mxu0
    %v559 = vadd.f32 %v451, %v558
    %v560 = vpop.f32.mrf.mxu0
    %v561 = vadd.f32 %v451, %v560
    %562 = vdwg.mxu0
    %563 = vmatpush.bf16.msra.mxu0 %v532
    %564 = vmatpush.bf16.msra.mxu0 %v531
    %565 = vmatpush.bf16.msra.mxu0 %v530
    %566 = vmatpush.bf16.msra.mxu0 %v529
    %567 = vmatpush.bf16.msra.mxu0 %v528
    %568 = vmatpush.bf16.msra.mxu0 %v527
    %569 = vmatpush.bf16.msra.mxu0 %v526
    %570 = vmatpush.bf16.msra.mxu0 %v525
    %571 = vmatmul.bf16.gmra.mxu0 %v417
    %v572 = vpop.f32.mrf.mxu0
    %v573 = vadd.f32 %v559, %v572
    %v574 = vpop.f32.mrf.mxu0
    %v575 = vadd.f32 %v561, %v574
    %576 = vdwg.mxu0
    %v577 = vpack.c.bf16 %v573, %v573
    %v578 = vpack.c.bf16 %v575, %v575
    %579 = vst [vmem:[#allocation11] sm:$0xf] %v577
    %580 = vst [vmem:[#allocation11 + $0x4] sm:$0xf] %v578
    // Predicated region
    $region42: #{tpu_custom_call.1} parent=1 // pred_check
      _
    $region43: #{tpu_custom_call.1} parent=1 // pred_check_branch
      %582 = sbr.rel (0) target = $region45
    $region44: #{tpu_custom_call.1} parent=1 // pred_region
      %584 = vsyncadd [#allocation4], 0
      %s585 = sshll.u32 [#allocation11], 4
      %s586 = int_to_ptr.vmem [resolvable:$true] %s585
      %s587 = sshll.u32 %s5, 4
      %s588 = int_to_ptr.hbm [resolvable:$true] %s587
      %593 = dma.vmem_to_hbm [thread:$0]  %s586, 128, %s588, [#allocation4], 64, 64, 4
    $region45: #{tpu_custom_call.1} parent=1 // pred_fallthru
      _
    // Predicated region
    $region46: #{tpu_custom_call.1} parent=1 // pred_check
      _
    $region47: #{tpu_custom_call.1} parent=1 // pred_check_branch
      %595 = sbr.rel (0) target = $region49
    $region48: #{tpu_custom_call.1} parent=1 // pred_region
      %597 = dma.done [#allocation4], 128
    $region49: #{tpu_custom_call.1} parent=1 // pred_fallthru
      _
    %598 = vsyncpa [#allocation3], 1
    %599 = vsyncpa [#allocation6], 1
    %600 = vsyncpa [#allocation9], 1
    %601 = vsyncpa [#allocation4], 1

</llo_original>
